<compile_context>
chip_gen: v5e
topology: v5e:2x2
jax: 0.10.0
libtpu: 0.0.40
codegen_flags: <defaults>
</compile_context>

<pallas_src>
import functools
import math

import jax
import jax.numpy as jnp
from jax import lax
from jax.experimental import pallas as pl
from jax.experimental.pallas import tpu as pltpu

LANE = 128
SUBLANE = 8


def _round_up(x, m):
    return (x + m - 1) // m * m


def _choose_tile_b(B, max_tile=512, min_steps=2):
    """Pick a sublane-aligned batch tile.

    * big tiles (cap `max_tile`, default 512) amortize per-grid-step overhead,
    * the cap also guarantees >= `min_steps` grid steps whenever the batch
      allows it, so ("parallel",) shards the batch across v7x's two TCs,
    * mildly prefer a tile that divides the (sublane-rounded) batch exactly so
      the clipped last tile does not waste MXU work on garbage rows.
    """
    B_sub = _round_up(B, SUBLANE)
    if B_sub <= SUBLANE * min_steps:
        return B_sub
    cap = min(max_tile, _round_up(pl.cdiv(B_sub, min_steps), SUBLANE))
    for t in range(cap, SUBLANE - 1, -SUBLANE):
        if B_sub % t == 0 and 4 * t >= cap:
            return t
    return cap


# ----------------------------------------------------------------------------
# Fused AE forward kernel (one batch tile per grid step)
# ----------------------------------------------------------------------------
def fused_ae_kernel(x_ref, w1e_ref, b1e_ref, wmu_ref, bmu_ref,
                    w1d_ref, b1d_ref, w2d_ref, b2d_ref,
                    mu_ref, recon_ref, loss_ref, *, batch, tile_b):
    """x -> h = relu(xW1e+b1e) -> mu = hWmu+bmu -> hd = relu(muW1d+b1d)
       -> recon = hdW2d+b2d, plus a masked per-tile SSE partial for loss_fn."""
    x = x_ref[...]
    h = jnp.maximum(
        jnp.dot(x, w1e_ref[...], preferred_element_type=jnp.float32) + b1e_ref[...],
        0.0)
    mu = jnp.dot(h, wmu_ref[...], preferred_element_type=jnp.float32) + bmu_ref[...]
    hd = jnp.maximum(
        jnp.dot(mu, w1d_ref[...], preferred_element_type=jnp.float32) + b1d_ref[...],
        0.0)
    recon = jnp.dot(hd, w2d_ref[...], preferred_element_type=jnp.float32) + b2d_ref[...]

    mu_ref[...] = mu.astype(mu_ref.dtype)
    recon_ref[...] = recon.astype(recon_ref.dtype)

    # Fused sum((recon - x)^2) partial. The last batch tile may be clipped, so
    # mask rows >= batch (zero-padded feature columns already contribute 0).
    row = pl.program_id(0) * tile_b + lax.broadcasted_iota(jnp.int32, (tile_b, 1), 0)
    diff = jnp.where(row < batch, recon - x, 0.0)
    partial = jnp.sum(diff * diff)
    # Lane/sublane-dense (1, 8, 128) block: scalar splat (read back as [i,0,0]).
    loss_ref[...] = jnp.zeros((1, SUBLANE, LANE), jnp.float32) + partial


# ----------------------------------------------------------------------------
# Wrapper
# ----------------------------------------------------------------------------
@functools.partial(jax.jit, static_argnames=("latent_dim", "tile_b"))
def base_ae_forward(x_nchw, pparams, *, latent_dim, tile_b=512):
    """BaseAE.forward: mu, _ = encoder(x); recon_x = decoder(mu).

    Returns ({'x', 'mu', 'recon_x'}, recon_loss) where recon_loss is the fused
    BaseAE.loss_fn value (sum-squared error), computed for free in the kernel.
    """
    B = x_nchw.shape[0]
    D = math.prod(x_nchw.shape[1:])
    x_flat = x_nchw.reshape(B, D)

    D_pad = pparams["w1_e"].shape[0]
    H_pad = pparams["w1_e"].shape[1]
    L_pad = pparams["w_mu"].shape[1]

    # Only pad the feature axis (skipped when D is already lane-aligned).
    if D != D_pad:
        x_flat = jnp.pad(x_flat, ((0, 0), (0, D_pad - D)))

    TILE_B = _choose_tile_b(B, max_tile=tile_b)
    n_tiles = pl.cdiv(B, TILE_B)           # ragged last tile handled in-kernel
    grid = (n_tiles,)

    def wspec(shape):
        # Weights / biases: same block every grid step -> VMEM-resident and
        # single-buffered (no point double-buffering a constant block).
        return pl.BlockSpec(shape, lambda i: (0, 0), pipeline_mode=pl.Buffered(1))

    # Static VMEM budget: x/recon/mu/loss tiles double-buffered, weights single.
    io_tile_bytes = 4 * (2 * TILE_B * D_pad + TILE_B * L_pad + SUBLANE * LANE)
    weight_bytes = 4 * (D_pad * H_pad + H_pad + H_pad * L_pad + L_pad
                        + L_pad * H_pad + H_pad + H_pad * D_pad + D_pad)
    vmem_need = 2 * io_tile_bytes + weight_bytes
    cp_kwargs = dict(dimension_semantics=("parallel",))   # megacore-friendly
    if vmem_need > 12 * 1024 * 1024:
        cp_kwargs["vmem_limit_bytes"] = min(int(vmem_need * 1.25) + (2 << 20),
                                            96 * 1024 * 1024)

    kernel = functools.partial(fused_ae_kernel, batch=B, tile_b=TILE_B)

    mu_out, recon_out, loss_parts = pl.pallas_call(
        kernel,
        out_shape=(
            jax.ShapeDtypeStruct((B, L_pad), jnp.float32),
            jax.ShapeDtypeStruct((B, D_pad), jnp.float32),
            jax.ShapeDtypeStruct((n_tiles, SUBLANE, LANE), jnp.float32),
        ),
        grid=grid,
        in_specs=[
            pl.BlockSpec((TILE_B, D_pad), lambda i: (i, 0)),   # x tile
            wspec((D_pad, H_pad)), wspec((1, H_pad)),          # encoder L1
            wspec((H_pad, L_pad)), wspec((1, L_pad)),          # mu head
            wspec((L_pad, H_pad)), wspec((1, H_pad)),          # decoder L1
            wspec((H_pad, D_pad)), wspec((1, D_pad)),          # decoder L2
        ],
        out_specs=(
            pl.BlockSpec((TILE_B, L_pad), lambda i: (i, 0)),   # mu tile
            pl.BlockSpec((TILE_B, D_pad), lambda i: (i, 0)),   # recon tile
            pl.BlockSpec((1, SUBLANE, LANE), lambda i: (i, 0, 0)),  # loss partial
        ),
        compiler_params=pltpu.CompilerParams(**cp_kwargs),
    )(x_flat,
      pparams["w1_e"], pparams["b1_e"],
      pparams["w_mu"], pparams["b_mu"],
      pparams["w1_d"], pparams["b1_d"],
      pparams["w2_d"], pparams["b2_d"])

    mu = mu_out[:, :latent_dim]
    recon_flat = recon_out[:, :D] if D != D_pad else recon_out
    recon_x = recon_flat.reshape(x_nchw.shape)
    recon_loss = jnp.sum(loss_parts[:, 0, 0])
    return {"x": x_nchw, "mu": mu, "recon_x": recon_x}, recon_loss


def loss_fn(x, mu, recon_x):
    # nn.functional.mse_loss(recon_x, x, reduction='sum')  (pure-JAX reference)
    return jnp.sum((recon_x - x) ** 2)


# ----------------------------------------------------------------------------
# Deterministic parameter init (+ one-time zero-padding to lane-dense shapes)
# ----------------------------------------------------------------------------
def init_params(key, in_dim, hidden, latent):
    ks = jax.random.split(key, 10)

    def lin(kw, kb, fan_in, fan_out):
        bound = 1.0 / jnp.sqrt(fan_in)
        w = jax.random.uniform(kw, (fan_in, fan_out), jnp.float32, -bound, bound)
        b = jax.random.uniform(kb, (1, fan_out), jnp.float32, -bound, bound)
        return w, b

    w1_e, b1_e = lin(ks[0], ks[1], in_dim, hidden)
    w_mu, b_mu = lin(ks[2], ks[3], hidden, latent)
    w_lv, b_lv = lin(ks[4], ks[5], hidden, latent)   # logvar head: unused in forward
    w1_d, b1_d = lin(ks[6], ks[7], latent, hidden)
    w2_d, b2_d = lin(ks[8], ks[9], hidden, in_dim)
    return dict(w1_e=w1_e, b1_e=b1_e, w_mu=w_mu, b_mu=b_mu, w_lv=w_lv, b_lv=b_lv,
                w1_d=w1_d, b1_d=b1_d, w2_d=w2_d, b2_d=b2_d)


def pad_params(params, in_dim, hidden, latent):
    """Zero-pad feature dims to multiples of 128 lanes (once, outside jit).
    Zero padding is exact: padded hidden/latent/recon columns stay exactly 0."""
    D_pad = _round_up(in_dim, LANE)
    H_pad = _round_up(hidden, LANE)
    L_pad = _round_up(latent, LANE)

    def pad2(a, r, c):
        return jnp.pad(a, ((0, r - a.shape[0]), (0, c - a.shape[1])))

    return dict(
        w1_e=pad2(params["w1_e"], D_pad, H_pad), b1_e=pad2(params["b1_e"], 1, H_pad),
        w_mu=pad2(params["w_mu"], H_pad, L_pad), b_mu=pad2(params["b_mu"], 1, L_pad),
        w1_d=pad2(params["w1_d"], L_pad, H_pad), b1_d=pad2(params["b1_d"], 1, H_pad),
        w2_d=pad2(params["w2_d"], H_pad, D_pad), b2_d=pad2(params["b2_d"], 1, D_pad),
    )


# ----------------------------------------------------------------------------
if __name__ == "__main__":
    B, C, H, W = 2, 4, 16, 16
    latent_dim = 8
    hidden = 32
    in_dim = C * H * W

    key = jax.random.PRNGKey(0)
    kx, kp = jax.random.split(key)
    x = jax.random.normal(kx, (B, C, H, W), dtype=jnp.float32)
    params = init_params(kp, in_dim, hidden, latent_dim)
    pparams = pad_params(params, in_dim, hidden, latent_dim)

    out, fused_loss = base_ae_forward(x, pparams, latent_dim=latent_dim)
    out = jax.tree_util.tree_map(jax.block_until_ready, out)
    fused_loss = jax.block_until_ready(fused_loss)

    # sanity on shapes / semantics
    assert out["x"].shape == (B, C, H, W)
    assert out["mu"].shape == (B, latent_dim)
    assert out["recon_x"].shape == (B, C, H, W)

    # reference check against plain JAX (unpadded params)
    xf = x.reshape(B, -1)
    h = jnp.maximum(xf @ params["w1_e"] + params["b1_e"], 0.0)
    mu_ref = h @ params["w_mu"] + params["b_mu"]
    hd = jnp.maximum(mu_ref @ params["w1_d"] + params["b1_d"], 0.0)
    recon_ref = (hd @ params["w2_d"] + params["b2_d"]).reshape(B, C, H, W)
    assert jnp.allclose(out["mu"], mu_ref, atol=1e-5)
    assert jnp.allclose(out["recon_x"], recon_ref, atol=1e-5)

    # fused loss vs. pure-JAX loss_fn (different summation order -> loose tol)
    ref_loss = jax.block_until_ready(loss_fn(out["x"], out["mu"], out["recon_x"]))
    assert jnp.allclose(fused_loss, ref_loss, rtol=1e-4, atol=1e-3)

    print("KERNEL_OK")
</pallas_src>

<mosaic_0001>
module attributes {stable_mosaic.version = 11 : i64} {
  func.func @fused_ae_kernel(%arg0: i32, %arg1: memref<8x1024xf32, #tpu.memory_space<vmem>>, %arg2: memref<1024x128xf32, #tpu.memory_space<vmem>>, %arg3: memref<1x128xf32, #tpu.memory_space<vmem>>, %arg4: memref<128x128xf32, #tpu.memory_space<vmem>>, %arg5: memref<1x128xf32, #tpu.memory_space<vmem>>, %arg6: memref<128x128xf32, #tpu.memory_space<vmem>>, %arg7: memref<1x128xf32, #tpu.memory_space<vmem>>, %arg8: memref<128x1024xf32, #tpu.memory_space<vmem>>, %arg9: memref<1x1024xf32, #tpu.memory_space<vmem>>, %arg10: memref<8x128xf32, #tpu.memory_space<vmem>>, %arg11: memref<8x1024xf32, #tpu.memory_space<vmem>>, %arg12: memref<1x8x128xf32, #tpu.memory_space<vmem>>) attributes {dimension_semantics = [#tpu.dimension_semantics<parallel>], iteration_bounds = array<i64: 1>, scalar_prefetch = 0 : i64, scratch_operands = 0 : i64, tpu.core_type = #tpu.core_type<tc>, window_params = [{transform_indices = @transform_0, window_bounds = array<i64: 8, 1024>}, {pipeline_mode = #tpu.pipeline_mode<synchronous>, transform_indices = @transform_1, window_bounds = array<i64: 1024, 128>}, {pipeline_mode = #tpu.pipeline_mode<synchronous>, transform_indices = @transform_2, window_bounds = array<i64: 1, 128>}, {pipeline_mode = #tpu.pipeline_mode<synchronous>, transform_indices = @transform_3, window_bounds = array<i64: 128, 128>}, {pipeline_mode = #tpu.pipeline_mode<synchronous>, transform_indices = @transform_4, window_bounds = array<i64: 1, 128>}, {pipeline_mode = #tpu.pipeline_mode<synchronous>, transform_indices = @transform_5, window_bounds = array<i64: 128, 128>}, {pipeline_mode = #tpu.pipeline_mode<synchronous>, transform_indices = @transform_6, window_bounds = array<i64: 1, 128>}, {pipeline_mode = #tpu.pipeline_mode<synchronous>, transform_indices = @transform_7, window_bounds = array<i64: 128, 1024>}, {pipeline_mode = #tpu.pipeline_mode<synchronous>, transform_indices = @transform_8, window_bounds = array<i64: 1, 1024>}, {transform_indices = @transform_9, window_bounds = array<i64: 8, 128>}, {transform_indices = @transform_10, window_bounds = array<i64: 8, 1024>}, {transform_indices = @transform_11, window_bounds = array<i64: 1, 8, 128>}]} {
    %c0 = arith.constant 0 : index
    %c0_0 = arith.constant 0 : index
    %0 = vector.load %arg1[%c0, %c0_0] : memref<8x1024xf32, #tpu.memory_space<vmem>>, vector<8x1024xf32>
    %c0_1 = arith.constant 0 : index
    %c0_2 = arith.constant 0 : index
    %1 = vector.load %arg2[%c0_1, %c0_2] : memref<1024x128xf32, #tpu.memory_space<vmem>>, vector<1024x128xf32>
    %cst = arith.constant dense<0.000000e+00> : vector<8x128xf32>
    %2 = tpu.matmul %0, %1, %cst {dimension_numbers = #tpu.dot_dimension_numbers<[1], [0], [0], [1], [0, 0, 1, 1], [], []>} : vector<8x1024xf32>, vector<1024x128xf32>, vector<8x128xf32> -> vector<8x128xf32>
    %c0_3 = arith.constant 0 : index
    %c0_4 = arith.constant 0 : index
    %3 = vector.load %arg3[%c0_3, %c0_4] : memref<1x128xf32, #tpu.memory_space<vmem>>, vector<1x128xf32>
    %4 = vector.broadcast %3 : vector<1x128xf32> to vector<8x128xf32>
    %5 = arith.addf %2, %4 : vector<8x128xf32>
    %cst_5 = arith.constant 0.000000e+00 : f32
    %6 = vector.broadcast %cst_5 : f32 to vector<8x128xf32>
    %7 = arith.maximumf %5, %6 : vector<8x128xf32>
    %c0_6 = arith.constant 0 : index
    %c0_7 = arith.constant 0 : index
    %8 = vector.load %arg4[%c0_6, %c0_7] : memref<128x128xf32, #tpu.memory_space<vmem>>, vector<128x128xf32>
    %cst_8 = arith.constant dense<0.000000e+00> : vector<8x128xf32>
    %9 = tpu.matmul %7, %8, %cst_8 {dimension_numbers = #tpu.dot_dimension_numbers<[1], [0], [0], [1], [0, 0, 1, 1], [], []>} : vector<8x128xf32>, vector<128x128xf32>, vector<8x128xf32> -> vector<8x128xf32>
    %c0_9 = arith.constant 0 : index
    %c0_10 = arith.constant 0 : index
    %10 = vector.load %arg5[%c0_9, %c0_10] : memref<1x128xf32, #tpu.memory_space<vmem>>, vector<1x128xf32>
    %11 = vector.broadcast %10 : vector<1x128xf32> to vector<8x128xf32>
    %12 = arith.addf %9, %11 : vector<8x128xf32>
    %c0_11 = arith.constant 0 : index
    %c0_12 = arith.constant 0 : index
    %13 = vector.load %arg6[%c0_11, %c0_12] : memref<128x128xf32, #tpu.memory_space<vmem>>, vector<128x128xf32>
    %cst_13 = arith.constant dense<0.000000e+00> : vector<8x128xf32>
    %14 = tpu.matmul %12, %13, %cst_13 {dimension_numbers = #tpu.dot_dimension_numbers<[1], [0], [0], [1], [0, 0, 1, 1], [], []>} : vector<8x128xf32>, vector<128x128xf32>, vector<8x128xf32> -> vector<8x128xf32>
    %c0_14 = arith.constant 0 : index
    %c0_15 = arith.constant 0 : index
    %15 = vector.load %arg7[%c0_14, %c0_15] : memref<1x128xf32, #tpu.memory_space<vmem>>, vector<1x128xf32>
    %16 = vector.broadcast %15 : vector<1x128xf32> to vector<8x128xf32>
    %17 = arith.addf %14, %16 : vector<8x128xf32>
    %cst_16 = arith.constant 0.000000e+00 : f32
    %18 = vector.broadcast %cst_16 : f32 to vector<8x128xf32>
    %19 = arith.maximumf %17, %18 : vector<8x128xf32>
    %c0_17 = arith.constant 0 : index
    %c0_18 = arith.constant 0 : index
    %20 = vector.load %arg8[%c0_17, %c0_18] : memref<128x1024xf32, #tpu.memory_space<vmem>>, vector<128x1024xf32>
    %cst_19 = arith.constant dense<0.000000e+00> : vector<8x1024xf32>
    %21 = tpu.matmul %19, %20, %cst_19 {dimension_numbers = #tpu.dot_dimension_numbers<[1], [0], [0], [1], [0, 0, 1, 1], [], []>} : vector<8x128xf32>, vector<128x1024xf32>, vector<8x1024xf32> -> vector<8x1024xf32>
    %c0_20 = arith.constant 0 : index
    %c0_21 = arith.constant 0 : index
    %22 = vector.load %arg9[%c0_20, %c0_21] : memref<1x1024xf32, #tpu.memory_space<vmem>>, vector<1x1024xf32>
    %23 = vector.broadcast %22 : vector<1x1024xf32> to vector<8x1024xf32>
    %24 = arith.addf %21, %23 : vector<8x1024xf32>
    %c0_22 = arith.constant 0 : index
    %c0_23 = arith.constant 0 : index
    %25 = vector.load %arg10[%c0_22, %c0_23] : memref<8x128xf32, #tpu.memory_space<vmem>>, vector<8x128xf32>
    tpu.vector_store %arg10[%c0_22, %c0_23], %12 {strides = array<i32>} : memref<8x128xf32, #tpu.memory_space<vmem>>, vector<8x128xf32>,
    %c0_24 = arith.constant 0 : index
    %c0_25 = arith.constant 0 : index
    %26 = vector.load %arg11[%c0_24, %c0_25] : memref<8x1024xf32, #tpu.memory_space<vmem>>, vector<8x1024xf32>
    tpu.vector_store %arg11[%c0_24, %c0_25], %24 {strides = array<i32>} : memref<8x1024xf32, #tpu.memory_space<vmem>>, vector<8x1024xf32>,
    %c8_i32 = arith.constant 8 : i32
    %27 = arith.muli %arg0, %c8_i32 : i32
    %28 = tpu.iota {dimensions = array<i32: 0>} : vector<8x1xi32>
    %29 = vector.broadcast %27 : i32 to vector<8x1xi32>
    %30 = arith.addi %29, %28 : vector<8x1xi32>
    %c2_i32 = arith.constant 2 : i32
    %31 = vector.broadcast %c2_i32 : i32 to vector<8x1xi32>
    %32 = arith.cmpi slt, %30, %31 : vector<8x1xi32>
    %33 = arith.subf %24, %0 : vector<8x1024xf32>
    %cst_26 = arith.constant 0.000000e+00 : f32
    %34 = vector.shape_cast %32 : vector<8x1xi1> to vector<8x1xi1>
    %35 = vector.broadcast %34 : vector<8x1xi1> to vector<8x1024xi1>
    %36 = vector.broadcast %cst_26 : f32 to vector<8x1024xf32>
    %37 = arith.select %35, %33, %36 : vector<8x1024xi1>, vector<8x1024xf32>
    %38 = arith.mulf %37, %37 : vector<8x1024xf32>
    %39 = vector.shape_cast %38 : vector<8x1024xf32> to vector<1x8x1024xf32>
    %cst_27 = arith.constant dense<0.000000e+00> : vector<1xf32>
    %40 = vector.multi_reduction <add>, %39, %cst_27 [1, 2] : vector<1x8x1024xf32> to vector<1xf32>
    %41 = vector.shape_cast %40 : vector<1xf32> to vector<1x1x1xf32>
    %42 = vector.extract %41[0, 0, 0] : f32 from vector<1x1x1xf32>
    %cst_28 = arith.constant 0.000000e+00 : f32
    %43 = vector.broadcast %cst_28 : f32 to vector<1x8x128xf32>
    %44 = vector.broadcast %42 : f32 to vector<1x8x128xf32>
    %45 = arith.addf %43, %44 : vector<1x8x128xf32>
    %c0_29 = arith.constant 0 : index
    %c0_30 = arith.constant 0 : index
    %c0_31 = arith.constant 0 : index
    %46 = vector.load %arg12[%c0_29, %c0_30, %c0_31] : memref<1x8x128xf32, #tpu.memory_space<vmem>>, vector<1x8x128xf32>
    tpu.vector_store %arg12[%c0_29, %c0_30, %c0_31], %45 {strides = array<i32>} : memref<1x8x128xf32, #tpu.memory_space<vmem>>, vector<1x8x128xf32>,
    return
  }
  func.func @transform_0(%arg0: i32) -> (i32, i32) {
    %c0_i32 = arith.constant 0 : i32
    %c0_i32_0 = arith.constant 0 : i32
    return %arg0, %c0_i32 : i32, i32
  }
  func.func @transform_1(%arg0: i32) -> (i32, i32) {
    %c0_i32 = arith.constant 0 : i32
    %c0_i32_0 = arith.constant 0 : i32
    %c0_i32_1 = arith.constant 0 : i32
    return %c0_i32, %c0_i32_0 : i32, i32
  }
  func.func @transform_2(%arg0: i32) -> (i32, i32) {
    %c0_i32 = arith.constant 0 : i32
    %c0_i32_0 = arith.constant 0 : i32
    %c0_i32_1 = arith.constant 0 : i32
    return %c0_i32, %c0_i32_0 : i32, i32
  }
  func.func @transform_3(%arg0: i32) -> (i32, i32) {
    %c0_i32 = arith.constant 0 : i32
    %c0_i32_0 = arith.constant 0 : i32
    %c0_i32_1 = arith.constant 0 : i32
    return %c0_i32, %c0_i32_0 : i32, i32
  }
  func.func @transform_4(%arg0: i32) -> (i32, i32) {
    %c0_i32 = arith.constant 0 : i32
    %c0_i32_0 = arith.constant 0 : i32
    %c0_i32_1 = arith.constant 0 : i32
    return %c0_i32, %c0_i32_0 : i32, i32
  }
  func.func @transform_5(%arg0: i32) -> (i32, i32) {
    %c0_i32 = arith.constant 0 : i32
    %c0_i32_0 = arith.constant 0 : i32
    %c0_i32_1 = arith.constant 0 : i32
    return %c0_i32, %c0_i32_0 : i32, i32
  }
  func.func @transform_6(%arg0: i32) -> (i32, i32) {
    %c0_i32 = arith.constant 0 : i32
    %c0_i32_0 = arith.constant 0 : i32
    %c0_i32_1 = arith.constant 0 : i32
    return %c0_i32, %c0_i32_0 : i32, i32
  }
  func.func @transform_7(%arg0: i32) -> (i32, i32) {
    %c0_i32 = arith.constant 0 : i32
    %c0_i32_0 = arith.constant 0 : i32
    %c0_i32_1 = arith.constant 0 : i32
    return %c0_i32, %c0_i32_0 : i32, i32
  }
  func.func @transform_8(%arg0: i32) -> (i32, i32) {
    %c0_i32 = arith.constant 0 : i32
    %c0_i32_0 = arith.constant 0 : i32
    %c0_i32_1 = arith.constant 0 : i32
    return %c0_i32, %c0_i32_0 : i32, i32
  }
  func.func @transform_9(%arg0: i32) -> (i32, i32) {
    %c0_i32 = arith.constant 0 : i32
    %c0_i32_0 = arith.constant 0 : i32
    return %arg0, %c0_i32 : i32, i32
  }
  func.func @transform_10(%arg0: i32) -> (i32, i32) {
    %c0_i32 = arith.constant 0 : i32
    %c0_i32_0 = arith.constant 0 : i32
    return %arg0, %c0_i32 : i32, i32
  }
  func.func @transform_11(%arg0: i32) -> (i32, i32, i32) {
    %c0_i32 = arith.constant 0 : i32
    %c0_i32_0 = arith.constant 0 : i32
    %c0_i32_1 = arith.constant 0 : i32
    return %arg0, %c0_i32, %c0_i32_0 : i32, i32, i32
  }
}

</mosaic_0001>

<llo_original>
// kernel: base_ae_forward.1
$region0: #{base_ae_forward.1}
  #allocation0 [shape = 'u32[]', space=smem, size = 0x4, offset = 0x4, fixed_abs, tag = 'smem constant byte address 0x4 - core index']
  #allocation1 [shape = 'u32[72,128]{1,0:T(1,128)}', space=vmem, size = 0x9000, scoped, tag = 'internal scratch']
  %s0 = inlined_call_operand.vmem [shape: f32[2,1024], index: 0, kind: input, shape index: {}]
  %s1 = inlined_call_operand.hbm [shape: f32[1024,128], index: 1, kind: input, shape index: {}]
  %s2 = inlined_call_operand.hbm [shape: f32[1,128], index: 2, kind: input, shape index: {}]
  %s3 = inlined_call_operand.vmem [shape: f32[128,128], index: 3, kind: input, shape index: {}]
  %s4 = inlined_call_operand.vmem [shape: f32[1,128], index: 4, kind: input, shape index: {}]
  %s5 = inlined_call_operand.hbm [shape: f32[128,128], index: 5, kind: input, shape index: {}]
  %s6 = inlined_call_operand.hbm [shape: f32[1,128], index: 6, kind: input, shape index: {}]
  %s7 = inlined_call_operand.hbm [shape: f32[128,1024], index: 7, kind: input, shape index: {}]
  %s8 = inlined_call_operand.vmem [shape: f32[1,1024], index: 8, kind: input, shape index: {}]
  %s9 = inlined_call_operand.hbm [shape: f32[2,128], index: 9, kind: output, shape index: {0}]
  %s10 = inlined_call_operand.vmem [shape: f32[2,1024], index: 10, kind: output, shape index: {1}]
  %s11 = inlined_call_operand.vmem [shape: f32[1,8,128], index: 11, kind: output, shape index: {2}]
  %12 = xla_tuple %s9, %s10, %s11
  %s13 = sld [smem:[#allocation0]]
  $region101: #{base_ae_forward.1} parent=0
    _
  %s15 = ssub.s32 1, %s13
  %s16 = scalar_select 0, %s15, %s13
  $region1: #{base_ae_forward.1} parent=0
    #allocation2 [shape = 'u8[524288]{0}', space=vmem, size = 0x80000, scoped, tag = 'input window, operand 1, single buffered']
    #allocation3 [shape = 's32[1]{0}', space=sflag, size = 0x4, scoped, tag = 'scoped memory for base_ae_forward.1']
    #allocation4 [shape = 's32[1]{0}', space=sflag, size = 0x4, scoped, tag = 'scoped memory for base_ae_forward.1']
    #allocation5 [shape = 'u8[512]{0}', space=vmem, size = 0x400, scoped, tag = 'input window, operand 2, single buffered']
    #allocation6 [shape = 's32[1]{0}', space=sflag, size = 0x4, scoped, tag = 'scoped memory for base_ae_forward.1']
    #allocation7 [shape = 'u8[65536]{0}', space=vmem, size = 0x10000, scoped, tag = 'input window, operand 5, single buffered']
    #allocation8 [shape = 'u8[512]{0}', space=vmem, size = 0x400, scoped, tag = 'input window, operand 6, single buffered']
    #allocation9 [shape = 's32[1]{0}', space=sflag, size = 0x4, scoped, tag = 'scoped memory for base_ae_forward.1']
    #allocation10 [shape = 'u8[524288]{0}', space=vmem, size = 0x80000, scoped, tag = 'input window, operand 7, single buffered']
    #allocation11 [shape = 'u8[4096]{0}', space=vmem, size = 0x1000, scoped, tag = 'output window, operand 0, single buffered']
    #allocation12 [shape = 'u8[32768]{0}', space=vmem, size = 0x8000, scoped, tag = 'output window, operand 1, single buffered']
    %17 = vsyncpa [#allocation3], 0
    %18 = vsyncpa [#allocation6], 0
    %19 = vsyncpa [#allocation9], 0
    %20 = vsyncpa [#allocation4], 0
    // Predicated region
    $region2: #{base_ae_forward.1} parent=1 // pred_check
      _
    $region3: #{base_ae_forward.1} parent=1 // pred_check_branch
      %22 = sbr.rel (0) target = $region5
    $region4: #{base_ae_forward.1} parent=1 // pred_region
      _
    $region5: #{base_ae_forward.1} parent=1 // pred_fallthru
      _
    // Predicated region
    $region6: #{base_ae_forward.1} parent=1 // pred_check
      _
    $region7: #{base_ae_forward.1} parent=1 // pred_check_branch
      %24 = sbr.rel (0) target = $region9
    $region8: #{base_ae_forward.1} parent=1 // pred_region
      %26 = vsyncadd [#allocation3], 0
      %s27 = sshll.u32 %s1, 4
      %s28 = int_to_ptr.hbm [resolvable:$true] %s27
      %s29 = sshll.u32 [#allocation2], 4
      %s30 = int_to_ptr.vmem [resolvable:$true] %s29
      %35 = dma.hbm_to_vmem [thread:$0]  %s28, 16384, %s30, [#allocation3], 128, 128, 8
    $region9: #{base_ae_forward.1} parent=1 // pred_fallthru
      _
    // Predicated region
    $region10: #{base_ae_forward.1} parent=1 // pred_check
      _
    $region11: #{base_ae_forward.1} parent=1 // pred_check_branch
      %37 = sbr.rel (0) target = $region13
    $region12: #{base_ae_forward.1} parent=1 // pred_region
      %39 = vsyncadd [#allocation6], 0
      %s41 = sshll.u32 %s2, 4
      %s42 = int_to_ptr.hbm [resolvable:$true] %s41
      %s43 = sshll.u32 [#allocation5], 4
      %s44 = int_to_ptr.vmem [resolvable:$true] %s43
      %46 = dma.hbm_to_vmem [thread:$0]  %s42, 16, %s44, [#allocation6]
    $region13: #{base_ae_forward.1} parent=1 // pred_fallthru
      _
    // Predicated region
    $region14: #{base_ae_forward.1} parent=1 // pred_check
      _
    $region15: #{base_ae_forward.1} parent=1 // pred_check_branch
      %48 = sbr.rel (0) target = $region17
    $region16: #{base_ae_forward.1} parent=1 // pred_region
      _
    $region17: #{base_ae_forward.1} parent=1 // pred_fallthru
      _
    // Predicated region
    $region18: #{base_ae_forward.1} parent=1 // pred_check
      _
    $region19: #{base_ae_forward.1} parent=1 // pred_check_branch
      %50 = sbr.rel (0) target = $region21
    $region20: #{base_ae_forward.1} parent=1 // pred_region
      _
    $region21: #{base_ae_forward.1} parent=1 // pred_fallthru
      _
    // Predicated region
    $region22: #{base_ae_forward.1} parent=1 // pred_check
      _
    $region23: #{base_ae_forward.1} parent=1 // pred_check_branch
      %52 = sbr.rel (0) target = $region25
    $region24: #{base_ae_forward.1} parent=1 // pred_region
      %54 = vsyncadd [#allocation6], 0
      %s55 = sshll.u32 %s5, 4
      %s56 = int_to_ptr.hbm [resolvable:$true] %s55
      %s57 = sshll.u32 [#allocation7], 4
      %s58 = int_to_ptr.vmem [resolvable:$true] %s57
      %63 = dma.hbm_to_vmem [thread:$0]  %s56, 2048, %s58, [#allocation6], 128, 128, 8
    $region25: #{base_ae_forward.1} parent=1 // pred_fallthru
      _
    // Predicated region
    $region26: #{base_ae_forward.1} parent=1 // pred_check
      _
    $region27: #{base_ae_forward.1} parent=1 // pred_check_branch
      %65 = sbr.rel (0) target = $region29
    $region28: #{base_ae_forward.1} parent=1 // pred_region
      %67 = vsyncadd [#allocation9], 0
      %s69 = sshll.u32 %s6, 4
      %s70 = int_to_ptr.hbm [resolvable:$true] %s69
      %s71 = sshll.u32 [#allocation8], 4
      %s72 = int_to_ptr.vmem [resolvable:$true] %s71
      %74 = dma.hbm_to_vmem [thread:$0]  %s70, 16, %s72, [#allocation9]
    $region29: #{base_ae_forward.1} parent=1 // pred_fallthru
      _
    // Predicated region
    $region30: #{base_ae_forward.1} parent=1 // pred_check
      _
    $region31: #{base_ae_forward.1} parent=1 // pred_check_branch
      %76 = sbr.rel (0) target = $region33
    $region32: #{base_ae_forward.1} parent=1 // pred_region
      %78 = vsyncadd [#allocation9], 0
      %s79 = sshll.u32 %s7, 4
      %s80 = int_to_ptr.hbm [resolvable:$true] %s79
      %s81 = sshll.u32 [#allocation10], 4
      %s82 = int_to_ptr.vmem [resolvable:$true] %s81
      %87 = dma.hbm_to_vmem [thread:$0]  %s80, 16384, %s82, [#allocation9], 1024, 1024, 64
    $region33: #{base_ae_forward.1} parent=1 // pred_fallthru
      _
    // Predicated region
    $region34: #{base_ae_forward.1} parent=1 // pred_check
      _
    $region35: #{base_ae_forward.1} parent=1 // pred_check_branch
      %89 = sbr.rel (0) target = $region37
    $region36: #{base_ae_forward.1} parent=1 // pred_region
      _
    $region37: #{base_ae_forward.1} parent=1 // pred_fallthru
      _
    // Predicated region
    $region38: #{base_ae_forward.1} parent=1 // pred_check
      _
    $region39: #{base_ae_forward.1} parent=1 // pred_check_branch
      %91 = sbr.rel (0) target = $region41
    $region40: #{base_ae_forward.1} parent=1 // pred_region
      %93 = dma.done [#allocation3], 16384
    $region41: #{base_ae_forward.1} parent=1 // pred_fallthru
      _
    // Predicated region
    $region42: #{base_ae_forward.1} parent=1 // pred_check
      _
    $region43: #{base_ae_forward.1} parent=1 // pred_check_branch
      %95 = sbr.rel (0) target = $region45
    $region44: #{base_ae_forward.1} parent=1 // pred_region
      %97 = dma.done [#allocation6], 16
    $region45: #{base_ae_forward.1} parent=1 // pred_fallthru
      _
    // Predicated region
    $region46: #{base_ae_forward.1} parent=1 // pred_check
      _
    $region47: #{base_ae_forward.1} parent=1 // pred_check_branch
      %99 = sbr.rel (0) target = $region49
    $region48: #{base_ae_forward.1} parent=1 // pred_region
      %101 = dma.done [#allocation6], 2048
    $region49: #{base_ae_forward.1} parent=1 // pred_fallthru
      _
    // Predicated region
    $region50: #{base_ae_forward.1} parent=1 // pred_check
      _
    $region51: #{base_ae_forward.1} parent=1 // pred_check_branch
      %103 = sbr.rel (0) target = $region53
    $region52: #{base_ae_forward.1} parent=1 // pred_region
      %105 = dma.done [#allocation9], 16
    $region53: #{base_ae_forward.1} parent=1 // pred_fallthru
      _
    // Predicated region
    $region54: #{base_ae_forward.1} parent=1 // pred_check
      _
    $region55: #{base_ae_forward.1} parent=1 // pred_check_branch
      %107 = sbr.rel (0) target = $region57
    $region56: #{base_ae_forward.1} parent=1 // pred_region
      %109 = dma.done [#allocation9], 16384
    $region57: #{base_ae_forward.1} parent=1 // pred_fallthru
      _
    %v110 = vld [vmem:[%s0] sm:$0xff]
    %v111 = vld [vmem:[%s0 + $0x8] sm:$0xff]
    %v112 = vld [vmem:[%s0 + $0x10] sm:$0xff]
    %v113 = vld [vmem:[%s0 + $0x18] sm:$0xff]
    %v114 = vld [vmem:[%s0 + $0x20] sm:$0xff]
    %v115 = vld [vmem:[%s0 + $0x28] sm:$0xff]
    %v116 = vld [vmem:[%s0 + $0x30] sm:$0xff]
    %v117 = vld [vmem:[%s0 + $0x38] sm:$0xff]
    %v118 = vld [vmem:[#allocation2] sm:$0xff]
    %v119 = vld [vmem:[#allocation2 + $0x8] sm:$0xff]
    %v120 = vld [vmem:[#allocation2 + $0x10] sm:$0xff]
    %v121 = vld [vmem:[#allocation2 + $0x18] sm:$0xff]
    %v122 = vld [vmem:[#allocation2 + $0x20] sm:$0xff]
    %v123 = vld [vmem:[#allocation2 + $0x28] sm:$0xff]
    %v124 = vld [vmem:[#allocation2 + $0x30] sm:$0xff]
    %v125 = vld [vmem:[#allocation2 + $0x38] sm:$0xff]
    %v126 = vld [vmem:[#allocation2 + $0x40] sm:$0xff]
    %v127 = vld [vmem:[#allocation2 + $0x48] sm:$0xff]
    %v128 = vld [vmem:[#allocation2 + $0x50] sm:$0xff]
    %v129 = vld [vmem:[#allocation2 + $0x58] sm:$0xff]
    %v130 = vld [vmem:[#allocation2 + $0x60] sm:$0xff]
    %v131 = vld [vmem:[#allocation2 + $0x68] sm:$0xff]
    %v132 = vld [vmem:[#allocation2 + $0x70] sm:$0xff]
    %v133 = vld [vmem:[#allocation2 + $0x78] sm:$0xff]
    %v134 = vld [vmem:[#allocation2 + $0x80] sm:$0xff]
    %v135 = vld [vmem:[#allocation2 + $0x88] sm:$0xff]
    %v136 = vld [vmem:[#allocation2 + $0x90] sm:$0xff]
    %v137 = vld [vmem:[#allocation2 + $0x98] sm:$0xff]
    %v138 = vld [vmem:[#allocation2 + $0xa0] sm:$0xff]
    %v139 = vld [vmem:[#allocation2 + $0xa8] sm:$0xff]
    %v140 = vld [vmem:[#allocation2 + $0xb0] sm:$0xff]
    %v141 = vld [vmem:[#allocation2 + $0xb8] sm:$0xff]
    %v142 = vld [vmem:[#allocation2 + $0xc0] sm:$0xff]
    %v143 = vld [vmem:[#allocation2 + $0xc8] sm:$0xff]
    %v144 = vld [vmem:[#allocation2 + $0xd0] sm:$0xff]
    %v145 = vld [vmem:[#allocation2 + $0xd8] sm:$0xff]
    %v146 = vld [vmem:[#allocation2 + $0xe0] sm:$0xff]
    %v147 = vld [vmem:[#allocation2 + $0xe8] sm:$0xff]
    %v148 = vld [vmem:[#allocation2 + $0xf0] sm:$0xff]
    %v149 = vld [vmem:[#allocation2 + $0xf8] sm:$0xff]
    %v150 = vld [vmem:[#allocation2 + $0x100] sm:$0xff]
    %v151 = vld [vmem:[#allocation2 + $0x108] sm:$0xff]
    %v152 = vld [vmem:[#allocation2 + $0x110] sm:$0xff]
    %v153 = vld [vmem:[#allocation2 + $0x118] sm:$0xff]
    %v154 = vld [vmem:[#allocation2 + $0x120] sm:$0xff]
    %v155 = vld [vmem:[#allocation2 + $0x128] sm:$0xff]
    %v156 = vld [vmem:[#allocation2 + $0x130] sm:$0xff]
    %v157 = vld [vmem:[#allocation2 + $0x138] sm:$0xff]
    %v158 = vld [vmem:[#allocation2 + $0x140] sm:$0xff]
    %v159 = vld [vmem:[#allocation2 + $0x148] sm:$0xff]
    %v160 = vld [vmem:[#allocation2 + $0x150] sm:$0xff]
    %v161 = vld [vmem:[#allocation2 + $0x158] sm:$0xff]
    %v162 = vld [vmem:[#allocation2 + $0x160] sm:$0xff]
    %v163 = vld [vmem:[#allocation2 + $0x168] sm:$0xff]
    %v164 = vld [vmem:[#allocation2 + $0x170] sm:$0xff]
    %v165 = vld [vmem:[#allocation2 + $0x178] sm:$0xff]
    %v166 = vld [vmem:[#allocation2 + $0x180] sm:$0xff]
    %v167 = vld [vmem:[#allocation2 + $0x188] sm:$0xff]
    %v168 = vld [vmem:[#allocation2 + $0x190] sm:$0xff]
    %v169 = vld [vmem:[#allocation2 + $0x198] sm:$0xff]
    %v170 = vld [vmem:[#allocation2 + $0x1a0] sm:$0xff]
    %v171 = vld [vmem:[#allocation2 + $0x1a8] sm:$0xff]
    %v172 = vld [vmem:[#allocation2 + $0x1b0] sm:$0xff]
    %v173 = vld [vmem:[#allocation2 + $0x1b8] sm:$0xff]
    %v174 = vld [vmem:[#allocation2 + $0x1c0] sm:$0xff]
    %v175 = vld [vmem:[#allocation2 + $0x1c8] sm:$0xff]
    %v176 = vld [vmem:[#allocation2 + $0x1d0] sm:$0xff]
    %v177 = vld [vmem:[#allocation2 + $0x1d8] sm:$0xff]
    %v178 = vld [vmem:[#allocation2 + $0x1e0] sm:$0xff]
    %v179 = vld [vmem:[#allocation2 + $0x1e8] sm:$0xff]
    %v180 = vld [vmem:[#allocation2 + $0x1f0] sm:$0xff]
    %v181 = vld [vmem:[#allocation2 + $0x1f8] sm:$0xff]
    %v182 = vld [vmem:[#allocation2 + $0x200] sm:$0xff]
    %v183 = vld [vmem:[#allocation2 + $0x208] sm:$0xff]
    %v184 = vld [vmem:[#allocation2 + $0x210] sm:$0xff]
    %v185 = vld [vmem:[#allocation2 + $0x218] sm:$0xff]
    %v186 = vld [vmem:[#allocation2 + $0x220] sm:$0xff]
    %v187 = vld [vmem:[#allocation2 + $0x228] sm:$0xff]
    %v188 = vld [vmem:[#allocation2 + $0x230] sm:$0xff]
    %v189 = vld [vmem:[#allocation2 + $0x238] sm:$0xff]
    %v190 = vld [vmem:[#allocation2 + $0x240] sm:$0xff]
    %v191 = vld [vmem:[#allocation2 + $0x248] sm:$0xff]
    %v192 = vld [vmem:[#allocation2 + $0x250] sm:$0xff]
    %v193 = vld [vmem:[#allocation2 + $0x258] sm:$0xff]
    %v194 = vld [vmem:[#allocation2 + $0x260] sm:$0xff]
    %v195 = vld [vmem:[#allocation2 + $0x268] sm:$0xff]
    %v196 = vld [vmem:[#allocation2 + $0x270] sm:$0xff]
    %v197 = vld [vmem:[#allocation2 + $0x278] sm:$0xff]
    %v198 = vld [vmem:[#allocation2 + $0x280] sm:$0xff]
    %v199 = vld [vmem:[#allocation2 + $0x288] sm:$0xff]
    %v200 = vld [vmem:[#allocation2 + $0x290] sm:$0xff]
    %v201 = vld [vmem:[#allocation2 + $0x298] sm:$0xff]
    %v202 = vld [vmem:[#allocation2 + $0x2a0] sm:$0xff]
    %v203 = vld [vmem:[#allocation2 + $0x2a8] sm:$0xff]
    %v204 = vld [vmem:[#allocation2 + $0x2b0] sm:$0xff]
    %v205 = vld [vmem:[#allocation2 + $0x2b8] sm:$0xff]
    %v206 = vld [vmem:[#allocation2 + $0x2c0] sm:$0xff]
    %v207 = vld [vmem:[#allocation2 + $0x2c8] sm:$0xff]
    %v208 = vld [vmem:[#allocation2 + $0x2d0] sm:$0xff]
    %v209 = vld [vmem:[#allocation2 + $0x2d8] sm:$0xff]
    %v210 = vld [vmem:[#allocation2 + $0x2e0] sm:$0xff]
    %v211 = vld [vmem:[#allocation2 + $0x2e8] sm:$0xff]
    %v212 = vld [vmem:[#allocation2 + $0x2f0] sm:$0xff]
    %v213 = vld [vmem:[#allocation2 + $0x2f8] sm:$0xff]
    %v214 = vld [vmem:[#allocation2 + $0x300] sm:$0xff]
    %v215 = vld [vmem:[#allocation2 + $0x308] sm:$0xff]
    %v216 = vld [vmem:[#allocation2 + $0x310] sm:$0xff]
    %v217 = vld [vmem:[#allocation2 + $0x318] sm:$0xff]
    %v218 = vld [vmem:[#allocation2 + $0x320] sm:$0xff]
    %v219 = vld [vmem:[#allocation2 + $0x328] sm:$0xff]
    %v220 = vld [vmem:[#allocation2 + $0x330] sm:$0xff]
    %v221 = vld [vmem:[#allocation2 + $0x338] sm:$0xff]
    %v222 = vld [vmem:[#allocation2 + $0x340] sm:$0xff]
    %v223 = vld [vmem:[#allocation2 + $0x348] sm:$0xff]
    %v224 = vld [vmem:[#allocation2 + $0x350] sm:$0xff]
    %v225 = vld [vmem:[#allocation2 + $0x358] sm:$0xff]
    %v226 = vld [vmem:[#allocation2 + $0x360] sm:$0xff]
    %v227 = vld [vmem:[#allocation2 + $0x368] sm:$0xff]
    %v228 = vld [vmem:[#allocation2 + $0x370] sm:$0xff]
    %v229 = vld [vmem:[#allocation2 + $0x378] sm:$0xff]
    %v230 = vld [vmem:[#allocation2 + $0x380] sm:$0xff]
    %v231 = vld [vmem:[#allocation2 + $0x388] sm:$0xff]
    %v232 = vld [vmem:[#allocation2 + $0x390] sm:$0xff]
    %v233 = vld [vmem:[#allocation2 + $0x398] sm:$0xff]
    %v234 = vld [vmem:[#allocation2 + $0x3a0] sm:$0xff]
    %v235 = vld [vmem:[#allocation2 + $0x3a8] sm:$0xff]
    %v236 = vld [vmem:[#allocation2 + $0x3b0] sm:$0xff]
    %v237 = vld [vmem:[#allocation2 + $0x3b8] sm:$0xff]
    %v238 = vld [vmem:[#allocation2 + $0x3c0] sm:$0xff]
    %v239 = vld [vmem:[#allocation2 + $0x3c8] sm:$0xff]
    %v240 = vld [vmem:[#allocation2 + $0x3d0] sm:$0xff]
    %v241 = vld [vmem:[#allocation2 + $0x3d8] sm:$0xff]
    %v242 = vld [vmem:[#allocation2 + $0x3e0] sm:$0xff]
    %v243 = vld [vmem:[#allocation2 + $0x3e8] sm:$0xff]
    %v244 = vld [vmem:[#allocation2 + $0x3f0] sm:$0xff]
    %v245 = vld [vmem:[#allocation2 + $0x3f8] sm:$0xff]
    %v246 = vld [vmem:[#allocation5] sm:$0x1]
    %v248 = vperm.slane %v246, 0
    %258 = vst [vmem:[#allocation1] ss:$4 sm:$0xff] %v110
    %s259 = scalar_lea.vmem [#allocation1], 1
    %260 = vst [vmem:[%s259] ss:$4 sm:$0xff] %v112
    %s261 = scalar_lea.vmem [#allocation1], 2
    %262 = vst [vmem:[%s261] ss:$4 sm:$0xff] %v114
    %s263 = scalar_lea.vmem [#allocation1], 3
    %264 = vst [vmem:[%s263] ss:$4 sm:$0xff] %v116
    %s265 = scalar_lea.vmem [#allocation1], 32
    %266 = vst [vmem:[%s265] ss:$4 sm:$0xff] %v111
    %s267 = scalar_lea.vmem [#allocation1], 33
    %268 = vst [vmem:[%s267] ss:$4 sm:$0xff] %v113
    %s269 = scalar_lea.vmem [#allocation1], 34
    %270 = vst [vmem:[%s269] ss:$4 sm:$0xff] %v115
    %s271 = scalar_lea.vmem [#allocation1], 35
    %272 = vst [vmem:[%s271] ss:$4 sm:$0xff] %v117
    %v273 = vld.sshfl [vmem:[#allocation1] sm:$0xff pattern:$0x73625140]
    %v274 = vld.sshfl [vmem:[#allocation1 + $0x8] sm:$0xff pattern:$0x73625140]
    %v275 = vld.sshfl [vmem:[#allocation1 + $0x10] sm:$0xff pattern:$0x73625140]
    %v276 = vld.sshfl [vmem:[#allocation1 + $0x18] sm:$0xff pattern:$0x73625140]
    %v277 = vld.sshfl [vmem:[#allocation1 + $0x20] sm:$0xff pattern:$0x73625140]
    %v278 = vld.sshfl [vmem:[#allocation1 + $0x28] sm:$0xff pattern:$0x73625140]
    %v279 = vld.sshfl [vmem:[#allocation1 + $0x30] sm:$0xff pattern:$0x73625140]
    %v280 = vld.sshfl [vmem:[#allocation1 + $0x38] sm:$0xff pattern:$0x73625140]
    %289 = vmatpush.msra.mxu0 %v133
    %290 = vmatpush.msra.mxu0 %v132
    %291 = vmatpush.msra.mxu0 %v131
    %292 = vmatpush.msra.mxu0 %v130
    %293 = vmatpush.msra.mxu0 %v129
    %294 = vmatpush.msra.mxu0 %v128
    %295 = vmatpush.msra.mxu0 %v127
    %296 = vmatpush.msra.mxu0 %v126
    %297 = vmatpush.msra.mxu0 %v125
    %298 = vmatpush.msra.mxu0 %v124
    %299 = vmatpush.msra.mxu0 %v123
    %300 = vmatpush.msra.mxu0 %v122
    %301 = vmatpush.msra.mxu0 %v121
    %302 = vmatpush.msra.mxu0 %v120
    %303 = vmatpush.msra.mxu0 %v119
    %304 = vmatpush.msra.mxu0 %v118
    %305 = vmatmul.f32.gmra.mxu0 %v273
    %v306 = vpop.f32.mrf.mxu0
    %v307 = vadd.f32 %v248, %v306
    %308 = vdwg.mxu0
    %309 = vmatpush.msra.mxu0 %v149
    %310 = vmatpush.msra.mxu0 %v148
    %311 = vmatpush.msra.mxu0 %v147
    %312 = vmatpush.msra.mxu0 %v146
    %313 = vmatpush.msra.mxu0 %v145
    %314 = vmatpush.msra.mxu0 %v144
    %315 = vmatpush.msra.mxu0 %v143
    %316 = vmatpush.msra.mxu0 %v142
    %317 = vmatpush.msra.mxu0 %v141
    %318 = vmatpush.msra.mxu0 %v140
    %319 = vmatpush.msra.mxu0 %v139
    %320 = vmatpush.msra.mxu0 %v138
    %321 = vmatpush.msra.mxu0 %v137
    %322 = vmatpush.msra.mxu0 %v136
    %323 = vmatpush.msra.mxu0 %v135
    %324 = vmatpush.msra.mxu0 %v134
    %325 = vmatmul.f32.gmra.mxu0 %v274
    %v326 = vpop.f32.mrf.mxu0
    %v327 = vadd.f32 %v307, %v326
    %328 = vdwg.mxu0
    %329 = vmatpush.msra.mxu0 %v165
    %330 = vmatpush.msra.mxu0 %v164
    %331 = vmatpush.msra.mxu0 %v163
    %332 = vmatpush.msra.mxu0 %v162
    %333 = vmatpush.msra.mxu0 %v161
    %334 = vmatpush.msra.mxu0 %v160
    %335 = vmatpush.msra.mxu0 %v159
    %336 = vmatpush.msra.mxu0 %v158
    %337 = vmatpush.msra.mxu0 %v157
    %338 = vmatpush.msra.mxu0 %v156
    %339 = vmatpush.msra.mxu0 %v155
    %340 = vmatpush.msra.mxu0 %v154
    %341 = vmatpush.msra.mxu0 %v153
    %342 = vmatpush.msra.mxu0 %v152
    %343 = vmatpush.msra.mxu0 %v151
    %344 = vmatpush.msra.mxu0 %v150
    %345 = vmatmul.f32.gmra.mxu0 %v275
    %v346 = vpop.f32.mrf.mxu0
    %v347 = vadd.f32 %v327, %v346
    %348 = vdwg.mxu0
    %349 = vmatpush.msra.mxu0 %v181
    %350 = vmatpush.msra.mxu0 %v180
    %351 = vmatpush.msra.mxu0 %v179
    %352 = vmatpush.msra.mxu0 %v178
    %353 = vmatpush.msra.mxu0 %v177
    %354 = vmatpush.msra.mxu0 %v176
    %355 = vmatpush.msra.mxu0 %v175
    %356 = vmatpush.msra.mxu0 %v174
    %357 = vmatpush.msra.mxu0 %v173
    %358 = vmatpush.msra.mxu0 %v172
    %359 = vmatpush.msra.mxu0 %v171
    %360 = vmatpush.msra.mxu0 %v170
    %361 = vmatpush.msra.mxu0 %v169
    %362 = vmatpush.msra.mxu0 %v168
    %363 = vmatpush.msra.mxu0 %v167
    %364 = vmatpush.msra.mxu0 %v166
    %365 = vmatmul.f32.gmra.mxu0 %v276
    %v366 = vpop.f32.mrf.mxu0
    %v367 = vadd.f32 %v347, %v366
    %368 = vdwg.mxu0
    %369 = vmatpush.msra.mxu0 %v197
    %370 = vmatpush.msra.mxu0 %v196
    %371 = vmatpush.msra.mxu0 %v195
    %372 = vmatpush.msra.mxu0 %v194
    %373 = vmatpush.msra.mxu0 %v193
    %374 = vmatpush.msra.mxu0 %v192
    %375 = vmatpush.msra.mxu0 %v191
    %376 = vmatpush.msra.mxu0 %v190
    %377 = vmatpush.msra.mxu0 %v189
    %378 = vmatpush.msra.mxu0 %v188
    %379 = vmatpush.msra.mxu0 %v187
    %380 = vmatpush.msra.mxu0 %v186
    %381 = vmatpush.msra.mxu0 %v185
    %382 = vmatpush.msra.mxu0 %v184
    %383 = vmatpush.msra.mxu0 %v183
    %384 = vmatpush.msra.mxu0 %v182
    %385 = vmatmul.f32.gmra.mxu0 %v277
    %v386 = vpop.f32.mrf.mxu0
    %v387 = vadd.f32 %v367, %v386
    %388 = vdwg.mxu0
    %389 = vmatpush.msra.mxu0 %v213
    %390 = vmatpush.msra.mxu0 %v212
    %391 = vmatpush.msra.mxu0 %v211
    %392 = vmatpush.msra.mxu0 %v210
    %393 = vmatpush.msra.mxu0 %v209
    %394 = vmatpush.msra.mxu0 %v208
    %395 = vmatpush.msra.mxu0 %v207
    %396 = vmatpush.msra.mxu0 %v206
    %397 = vmatpush.msra.mxu0 %v205
    %398 = vmatpush.msra.mxu0 %v204
    %399 = vmatpush.msra.mxu0 %v203
    %400 = vmatpush.msra.mxu0 %v202
    %401 = vmatpush.msra.mxu0 %v201
    %402 = vmatpush.msra.mxu0 %v200
    %403 = vmatpush.msra.mxu0 %v199
    %404 = vmatpush.msra.mxu0 %v198
    %405 = vmatmul.f32.gmra.mxu0 %v278
    %v406 = vpop.f32.mrf.mxu0
    %v407 = vadd.f32 %v387, %v406
    %408 = vdwg.mxu0
    %409 = vmatpush.msra.mxu0 %v229
    %410 = vmatpush.msra.mxu0 %v228
    %411 = vmatpush.msra.mxu0 %v227
    %412 = vmatpush.msra.mxu0 %v226
    %413 = vmatpush.msra.mxu0 %v225
    %414 = vmatpush.msra.mxu0 %v224
    %415 = vmatpush.msra.mxu0 %v223
    %416 = vmatpush.msra.mxu0 %v222
    %417 = vmatpush.msra.mxu0 %v221
    %418 = vmatpush.msra.mxu0 %v220
    %419 = vmatpush.msra.mxu0 %v219
    %420 = vmatpush.msra.mxu0 %v218
    %421 = vmatpush.msra.mxu0 %v217
    %422 = vmatpush.msra.mxu0 %v216
    %423 = vmatpush.msra.mxu0 %v215
    %424 = vmatpush.msra.mxu0 %v214
    %425 = vmatmul.f32.gmra.mxu0 %v279
    %v426 = vpop.f32.mrf.mxu0
    %v427 = vadd.f32 %v407, %v426
    %428 = vdwg.mxu0
    %429 = vmatpush.msra.mxu0 %v245
    %430 = vmatpush.msra.mxu0 %v244
    %431 = vmatpush.msra.mxu0 %v243
    %432 = vmatpush.msra.mxu0 %v242
    %433 = vmatpush.msra.mxu0 %v241
    %434 = vmatpush.msra.mxu0 %v240
    %435 = vmatpush.msra.mxu0 %v239
    %436 = vmatpush.msra.mxu0 %v238
    %437 = vmatpush.msra.mxu0 %v237
    %438 = vmatpush.msra.mxu0 %v236
    %439 = vmatpush.msra.mxu0 %v235
    %440 = vmatpush.msra.mxu0 %v234
    %441 = vmatpush.msra.mxu0 %v233
    %442 = vmatpush.msra.mxu0 %v232
    %443 = vmatpush.msra.mxu0 %v231
    %444 = vmatpush.msra.mxu0 %v230
    %445 = vmatmul.f32.gmra.mxu0 %v280
    %v446 = vpop.f32.mrf.mxu0
    %v447 = vadd.f32 %v427, %v446
    %448 = vdwg.mxu0
    %v449 = vmax.f32 %v447, 0.0
    %v450 = vld [vmem:[%s3] sm:$0xff]
    %v451 = vld [vmem:[%s3 + $0x8] sm:$0xff]
    %v452 = vld [vmem:[%s3 + $0x10] sm:$0xff]
    %v453 = vld [vmem:[%s3 + $0x18] sm:$0xff]
    %v454 = vld [vmem:[%s3 + $0x20] sm:$0xff]
    %v455 = vld [vmem:[%s3 + $0x28] sm:$0xff]
    %v456 = vld [vmem:[%s3 + $0x30] sm:$0xff]
    %v457 = vld [vmem:[%s3 + $0x38] sm:$0xff]
    %v458 = vld [vmem:[%s3 + $0x40] sm:$0xff]
    %v459 = vld [vmem:[%s3 + $0x48] sm:$0xff]
    %v460 = vld [vmem:[%s3 + $0x50] sm:$0xff]
    %v461 = vld [vmem:[%s3 + $0x58] sm:$0xff]
    %v462 = vld [vmem:[%s3 + $0x60] sm:$0xff]
    %v463 = vld [vmem:[%s3 + $0x68] sm:$0xff]
    %v464 = vld [vmem:[%s3 + $0x70] sm:$0xff]
    %v465 = vld [vmem:[%s3 + $0x78] sm:$0xff]
    %v466 = vld [vmem:[%s4] sm:$0x1]
    %v468 = vperm.slane %v466, 0
    %470 = vmatpush.msra.mxu0 %v465
    %471 = vmatpush.msra.mxu0 %v464
    %472 = vmatpush.msra.mxu0 %v463
    %473 = vmatpush.msra.mxu0 %v462
    %474 = vmatpush.msra.mxu0 %v461
    %475 = vmatpush.msra.mxu0 %v460
    %476 = vmatpush.msra.mxu0 %v459
    %477 = vmatpush.msra.mxu0 %v458
    %478 = vmatpush.msra.mxu0 %v457
    %479 = vmatpush.msra.mxu0 %v456
    %480 = vmatpush.msra.mxu0 %v455
    %481 = vmatpush.msra.mxu0 %v454
    %482 = vmatpush.msra.mxu0 %v453
    %483 = vmatpush.msra.mxu0 %v452
    %484 = vmatpush.msra.mxu0 %v451
    %485 = vmatpush.msra.mxu0 %v450
    %486 = vmatmul.f32.gmra.mxu0 %v449
    %v487 = vpop.f32.mrf.mxu0
    %v488 = vadd.f32 %v468, %v487
    %489 = vdwg.mxu0
    %v490 = vld [vmem:[#allocation7] sm:$0xff]
    %v491 = vld [vmem:[#allocation7 + $0x8] sm:$0xff]
    %v492 = vld [vmem:[#allocation7 + $0x10] sm:$0xff]
    %v493 = vld [vmem:[#allocation7 + $0x18] sm:$0xff]
    %v494 = vld [vmem:[#allocation7 + $0x20] sm:$0xff]
    %v495 = vld [vmem:[#allocation7 + $0x28] sm:$0xff]
    %v496 = vld [vmem:[#allocation7 + $0x30] sm:$0xff]
    %v497 = vld [vmem:[#allocation7 + $0x38] sm:$0xff]
    %v498 = vld [vmem:[#allocation7 + $0x40] sm:$0xff]
    %v499 = vld [vmem:[#allocation7 + $0x48] sm:$0xff]
    %v500 = vld [vmem:[#allocation7 + $0x50] sm:$0xff]
    %v501 = vld [vmem:[#allocation7 + $0x58] sm:$0xff]
    %v502 = vld [vmem:[#allocation7 + $0x60] sm:$0xff]
    %v503 = vld [vmem:[#allocation7 + $0x68] sm:$0xff]
    %v504 = vld [vmem:[#allocation7 + $0x70] sm:$0xff]
    %v505 = vld [vmem:[#allocation7 + $0x78] sm:$0xff]
    %v506 = vld [vmem:[#allocation8] sm:$0x1]
    %v508 = vperm.slane %v506, 0
    %510 = vmatpush.msra.mxu0 %v505
    %511 = vmatpush.msra.mxu0 %v504
    %512 = vmatpush.msra.mxu0 %v503
    %513 = vmatpush.msra.mxu0 %v502
    %514 = vmatpush.msra.mxu0 %v501
    %515 = vmatpush.msra.mxu0 %v500
    %516 = vmatpush.msra.mxu0 %v499
    %517 = vmatpush.msra.mxu0 %v498
    %518 = vmatpush.msra.mxu0 %v497
    %519 = vmatpush.msra.mxu0 %v496
    %520 = vmatpush.msra.mxu0 %v495
    %521 = vmatpush.msra.mxu0 %v494
    %522 = vmatpush.msra.mxu0 %v493
    %523 = vmatpush.msra.mxu0 %v492
    %524 = vmatpush.msra.mxu0 %v491
    %525 = vmatpush.msra.mxu0 %v490
    %526 = vmatmul.f32.gmra.mxu0 %v488
    %v527 = vpop.f32.mrf.mxu0
    %v528 = vadd.f32 %v508, %v527
    %529 = vdwg.mxu0
    %v530 = vmax.f32 %v528, 0.0
    %v531 = vld [vmem:[#allocation10] sm:$0xff]
    %v532 = vld [vmem:[#allocation10 + $0x8] sm:$0xff]
    %v533 = vld [vmem:[#allocation10 + $0x10] sm:$0xff]
    %v534 = vld [vmem:[#allocation10 + $0x18] sm:$0xff]
    %v535 = vld [vmem:[#allocation10 + $0x20] sm:$0xff]
    %v536 = vld [vmem:[#allocation10 + $0x28] sm:$0xff]
    %v537 = vld [vmem:[#allocation10 + $0x30] sm:$0xff]
    %v538 = vld [vmem:[#allocation10 + $0x38] sm:$0xff]
    %v539 = vld [vmem:[#allocation10 + $0x40] sm:$0xff]
    %v540 = vld [vmem:[#allocation10 + $0x48] sm:$0xff]
    %v541 = vld [vmem:[#allocation10 + $0x50] sm:$0xff]
    %v542 = vld [vmem:[#allocation10 + $0x58] sm:$0xff]
    %v543 = vld [vmem:[#allocation10 + $0x60] sm:$0xff]
    %v544 = vld [vmem:[#allocation10 + $0x68] sm:$0xff]
    %v545 = vld [vmem:[#allocation10 + $0x70] sm:$0xff]
    %v546 = vld [vmem:[#allocation10 + $0x78] sm:$0xff]
    %v547 = vld [vmem:[#allocation10 + $0x80] sm:$0xff]
    %v548 = vld [vmem:[#allocation10 + $0x88] sm:$0xff]
    %v549 = vld [vmem:[#allocation10 + $0x90] sm:$0xff]
    %v550 = vld [vmem:[#allocation10 + $0x98] sm:$0xff]
    %v551 = vld [vmem:[#allocation10 + $0xa0] sm:$0xff]
    %v552 = vld [vmem:[#allocation10 + $0xa8] sm:$0xff]
    %v553 = vld [vmem:[#allocation10 + $0xb0] sm:$0xff]
    %v554 = vld [vmem:[#allocation10 + $0xb8] sm:$0xff]
    %v555 = vld [vmem:[#allocation10 + $0xc0] sm:$0xff]
    %v556 = vld [vmem:[#allocation10 + $0xc8] sm:$0xff]
    %v557 = vld [vmem:[#allocation10 + $0xd0] sm:$0xff]
    %v558 = vld [vmem:[#allocation10 + $0xd8] sm:$0xff]
    %v559 = vld [vmem:[#allocation10 + $0xe0] sm:$0xff]
    %v560 = vld [vmem:[#allocation10 + $0xe8] sm:$0xff]
    %v561 = vld [vmem:[#allocation10 + $0xf0] sm:$0xff]
    %v562 = vld [vmem:[#allocation10 + $0xf8] sm:$0xff]
    %v563 = vld [vmem:[#allocation10 + $0x100] sm:$0xff]
    %v564 = vld [vmem:[#allocation10 + $0x108] sm:$0xff]
    %v565 = vld [vmem:[#allocation10 + $0x110] sm:$0xff]
    %v566 = vld [vmem:[#allocation10 + $0x118] sm:$0xff]
    %v567 = vld [vmem:[#allocation10 + $0x120] sm:$0xff]
    %v568 = vld [vmem:[#allocation10 + $0x128] sm:$0xff]
    %v569 = vld [vmem:[#allocation10 + $0x130] sm:$0xff]
    %v570 = vld [vmem:[#allocation10 + $0x138] sm:$0xff]
    %v571 = vld [vmem:[#allocation10 + $0x140] sm:$0xff]
    %v572 = vld [vmem:[#allocation10 + $0x148] sm:$0xff]
    %v573 = vld [vmem:[#allocation10 + $0x150] sm:$0xff]
    %v574 = vld [vmem:[#allocation10 + $0x158] sm:$0xff]
    %v575 = vld [vmem:[#allocation10 + $0x160] sm:$0xff]
    %v576 = vld [vmem:[#allocation10 + $0x168] sm:$0xff]
    %v577 = vld [vmem:[#allocation10 + $0x170] sm:$0xff]
    %v578 = vld [vmem:[#allocation10 + $0x178] sm:$0xff]
    %v579 = vld [vmem:[#allocation10 + $0x180] sm:$0xff]
    %v580 = vld [vmem:[#allocation10 + $0x188] sm:$0xff]
    %v581 = vld [vmem:[#allocation10 + $0x190] sm:$0xff]
    %v582 = vld [vmem:[#allocation10 + $0x198] sm:$0xff]
    %v583 = vld [vmem:[#allocation10 + $0x1a0] sm:$0xff]
    %v584 = vld [vmem:[#allocation10 + $0x1a8] sm:$0xff]
    %v585 = vld [vmem:[#allocation10 + $0x1b0] sm:$0xff]
    %v586 = vld [vmem:[#allocation10 + $0x1b8] sm:$0xff]
    %v587 = vld [vmem:[#allocation10 + $0x1c0] sm:$0xff]
    %v588 = vld [vmem:[#allocation10 + $0x1c8] sm:$0xff]
    %v589 = vld [vmem:[#allocation10 + $0x1d0] sm:$0xff]
    %v590 = vld [vmem:[#allocation10 + $0x1d8] sm:$0xff]
    %v591 = vld [vmem:[#allocation10 + $0x1e0] sm:$0xff]
    %v592 = vld [vmem:[#allocation10 + $0x1e8] sm:$0xff]
    %v593 = vld [vmem:[#allocation10 + $0x1f0] sm:$0xff]
    %v594 = vld [vmem:[#allocation10 + $0x1f8] sm:$0xff]
    %v595 = vld [vmem:[#allocation10 + $0x200] sm:$0xff]
    %v596 = vld [vmem:[#allocation10 + $0x208] sm:$0xff]
    %v597 = vld [vmem:[#allocation10 + $0x210] sm:$0xff]
    %v598 = vld [vmem:[#allocation10 + $0x218] sm:$0xff]
    %v599 = vld [vmem:[#allocation10 + $0x220] sm:$0xff]
    %v600 = vld [vmem:[#allocation10 + $0x228] sm:$0xff]
    %v601 = vld [vmem:[#allocation10 + $0x230] sm:$0xff]
    %v602 = vld [vmem:[#allocation10 + $0x238] sm:$0xff]
    %v603 = vld [vmem:[#allocation10 + $0x240] sm:$0xff]
    %v604 = vld [vmem:[#allocation10 + $0x248] sm:$0xff]
    %v605 = vld [vmem:[#allocation10 + $0x250] sm:$0xff]
    %v606 = vld [vmem:[#allocation10 + $0x258] sm:$0xff]
    %v607 = vld [vmem:[#allocation10 + $0x260] sm:$0xff]
    %v608 = vld [vmem:[#allocation10 + $0x268] sm:$0xff]
    %v609 = vld [vmem:[#allocation10 + $0x270] sm:$0xff]
    %v610 = vld [vmem:[#allocation10 + $0x278] sm:$0xff]
    %v611 = vld [vmem:[#allocation10 + $0x280] sm:$0xff]
    %v612 = vld [vmem:[#allocation10 + $0x288] sm:$0xff]
    %v613 = vld [vmem:[#allocation10 + $0x290] sm:$0xff]
    %v614 = vld [vmem:[#allocation10 + $0x298] sm:$0xff]
    %v615 = vld [vmem:[#allocation10 + $0x2a0] sm:$0xff]
    %v616 = vld [vmem:[#allocation10 + $0x2a8] sm:$0xff]
    %v617 = vld [vmem:[#allocation10 + $0x2b0] sm:$0xff]
    %v618 = vld [vmem:[#allocation10 + $0x2b8] sm:$0xff]
    %v619 = vld [vmem:[#allocation10 + $0x2c0] sm:$0xff]
    %v620 = vld [vmem:[#allocation10 + $0x2c8] sm:$0xff]
    %v621 = vld [vmem:[#allocation10 + $0x2d0] sm:$0xff]
    %v622 = vld [vmem:[#allocation10 + $0x2d8] sm:$0xff]
    %v623 = vld [vmem:[#allocation10 + $0x2e0] sm:$0xff]
    %v624 = vld [vmem:[#allocation10 + $0x2e8] sm:$0xff]
    %v625 = vld [vmem:[#allocation10 + $0x2f0] sm:$0xff]
    %v626 = vld [vmem:[#allocation10 + $0x2f8] sm:$0xff]
    %v627 = vld [vmem:[#allocation10 + $0x300] sm:$0xff]
    %v628 = vld [vmem:[#allocation10 + $0x308] sm:$0xff]
    %v629 = vld [vmem:[#allocation10 + $0x310] sm:$0xff]
    %v630 = vld [vmem:[#allocation10 + $0x318] sm:$0xff]
    %v631 = vld [vmem:[#allocation10 + $0x320] sm:$0xff]
    %v632 = vld [vmem:[#allocation10 + $0x328] sm:$0xff]
    %v633 = vld [vmem:[#allocation10 + $0x330] sm:$0xff]
    %v634 = vld [vmem:[#allocation10 + $0x338] sm:$0xff]
    %v635 = vld [vmem:[#allocation10 + $0x340] sm:$0xff]
    %v636 = vld [vmem:[#allocation10 + $0x348] sm:$0xff]
    %v637 = vld [vmem:[#allocation10 + $0x350] sm:$0xff]
    %v638 = vld [vmem:[#allocation10 + $0x358] sm:$0xff]
    %v639 = vld [vmem:[#allocation10 + $0x360] sm:$0xff]
    %v640 = vld [vmem:[#allocation10 + $0x368] sm:$0xff]
    %v641 = vld [vmem:[#allocation10 + $0x370] sm:$0xff]
    %v642 = vld [vmem:[#allocation10 + $0x378] sm:$0xff]
    %v643 = vld [vmem:[#allocation10 + $0x380] sm:$0xff]
    %v644 = vld [vmem:[#allocation10 + $0x388] sm:$0xff]
    %v645 = vld [vmem:[#allocation10 + $0x390] sm:$0xff]
    %v646 = vld [vmem:[#allocation10 + $0x398] sm:$0xff]
    %v647 = vld [vmem:[#allocation10 + $0x3a0] sm:$0xff]
    %v648 = vld [vmem:[#allocation10 + $0x3a8] sm:$0xff]
    %v649 = vld [vmem:[#allocation10 + $0x3b0] sm:$0xff]
    %v650 = vld [vmem:[#allocation10 + $0x3b8] sm:$0xff]
    %v651 = vld [vmem:[#allocation10 + $0x3c0] sm:$0xff]
    %v652 = vld [vmem:[#allocation10 + $0x3c8] sm:$0xff]
    %v653 = vld [vmem:[#allocation10 + $0x3d0] sm:$0xff]
    %v654 = vld [vmem:[#allocation10 + $0x3d8] sm:$0xff]
    %v655 = vld [vmem:[#allocation10 + $0x3e0] sm:$0xff]
    %v656 = vld [vmem:[#allocation10 + $0x3e8] sm:$0xff]
    %v657 = vld [vmem:[#allocation10 + $0x3f0] sm:$0xff]
    %v658 = vld [vmem:[#allocation10 + $0x3f8] sm:$0xff]
    %v659 = vld [vmem:[%s8] sm:$0xff]
    %v661 = vperm.slane %v659, 0
    %v662 = vperm.slane %v659, 1
    %v663 = vperm.slane %v659, 2
    %v664 = vperm.slane %v659, 3
    %v665 = vperm.slane %v659, 4
    %v666 = vperm.slane %v659, 5
    %v667 = vperm.slane %v659, 6
    %v668 = vperm.slane %v659, 7
    %677 = vmatpush.msra.mxu0 %v651
    %678 = vmatpush.msra.mxu0 %v643
    %679 = vmatpush.msra.mxu0 %v635
    %680 = vmatpush.msra.mxu0 %v627
    %681 = vmatpush.msra.mxu0 %v619
    %682 = vmatpush.msra.mxu0 %v611
    %683 = vmatpush.msra.mxu0 %v603
    %684 = vmatpush.msra.mxu0 %v595
    %685 = vmatpush.msra.mxu0 %v587
    %686 = vmatpush.msra.mxu0 %v579
    %687 = vmatpush.msra.mxu0 %v571
    %688 = vmatpush.msra.mxu0 %v563
    %689 = vmatpush.msra.mxu0 %v555
    %690 = vmatpush.msra.mxu0 %v547
    %691 = vmatpush.msra.mxu0 %v539
    %692 = vmatpush.msra.mxu0 %v531
    %693 = vmatmul.f32.gmra.mxu0 %v530
    %v694 = vpop.f32.mrf.mxu0
    %v695 = vadd.f32 %v661, %v694
    %696 = vdwg.mxu0
    %697 = vmatpush.msra.mxu0 %v652
    %698 = vmatpush.msra.mxu0 %v644
    %699 = vmatpush.msra.mxu0 %v636
    %700 = vmatpush.msra.mxu0 %v628
    %701 = vmatpush.msra.mxu0 %v620
    %702 = vmatpush.msra.mxu0 %v612
    %703 = vmatpush.msra.mxu0 %v604
    %704 = vmatpush.msra.mxu0 %v596
    %705 = vmatpush.msra.mxu0 %v588
    %706 = vmatpush.msra.mxu0 %v580
    %707 = vmatpush.msra.mxu0 %v572
    %708 = vmatpush.msra.mxu0 %v564
    %709 = vmatpush.msra.mxu0 %v556
    %710 = vmatpush.msra.mxu0 %v548
    %711 = vmatpush.msra.mxu0 %v540
    %712 = vmatpush.msra.mxu0 %v532
    %713 = vmatmul.f32.gmra.mxu0 %v530
    %v714 = vpop.f32.mrf.mxu0
    %v715 = vadd.f32 %v662, %v714
    %716 = vdwg.mxu0
    %717 = vmatpush.msra.mxu0 %v653
    %718 = vmatpush.msra.mxu0 %v645
    %719 = vmatpush.msra.mxu0 %v637
    %720 = vmatpush.msra.mxu0 %v629
    %721 = vmatpush.msra.mxu0 %v621
    %722 = vmatpush.msra.mxu0 %v613
    %723 = vmatpush.msra.mxu0 %v605
    %724 = vmatpush.msra.mxu0 %v597
    %725 = vmatpush.msra.mxu0 %v589
    %726 = vmatpush.msra.mxu0 %v581
    %727 = vmatpush.msra.mxu0 %v573
    %728 = vmatpush.msra.mxu0 %v565
    %729 = vmatpush.msra.mxu0 %v557
    %730 = vmatpush.msra.mxu0 %v549
    %731 = vmatpush.msra.mxu0 %v541
    %732 = vmatpush.msra.mxu0 %v533
    %733 = vmatmul.f32.gmra.mxu0 %v530
    %v734 = vpop.f32.mrf.mxu0
    %v735 = vadd.f32 %v663, %v734
    %736 = vdwg.mxu0
    %737 = vmatpush.msra.mxu0 %v654
    %738 = vmatpush.msra.mxu0 %v646
    %739 = vmatpush.msra.mxu0 %v638
    %740 = vmatpush.msra.mxu0 %v630
    %741 = vmatpush.msra.mxu0 %v622
    %742 = vmatpush.msra.mxu0 %v614
    %743 = vmatpush.msra.mxu0 %v606
    %744 = vmatpush.msra.mxu0 %v598
    %745 = vmatpush.msra.mxu0 %v590
    %746 = vmatpush.msra.mxu0 %v582
    %747 = vmatpush.msra.mxu0 %v574
    %748 = vmatpush.msra.mxu0 %v566
    %749 = vmatpush.msra.mxu0 %v558
    %750 = vmatpush.msra.mxu0 %v550
    %751 = vmatpush.msra.mxu0 %v542
    %752 = vmatpush.msra.mxu0 %v534
    %753 = vmatmul.f32.gmra.mxu0 %v530
    %v754 = vpop.f32.mrf.mxu0
    %v755 = vadd.f32 %v664, %v754
    %756 = vdwg.mxu0
    %757 = vmatpush.msra.mxu0 %v655
    %758 = vmatpush.msra.mxu0 %v647
    %759 = vmatpush.msra.mxu0 %v639
    %760 = vmatpush.msra.mxu0 %v631
    %761 = vmatpush.msra.mxu0 %v623
    %762 = vmatpush.msra.mxu0 %v615
    %763 = vmatpush.msra.mxu0 %v607
    %764 = vmatpush.msra.mxu0 %v599
    %765 = vmatpush.msra.mxu0 %v591
    %766 = vmatpush.msra.mxu0 %v583
    %767 = vmatpush.msra.mxu0 %v575
    %768 = vmatpush.msra.mxu0 %v567
    %769 = vmatpush.msra.mxu0 %v559
    %770 = vmatpush.msra.mxu0 %v551
    %771 = vmatpush.msra.mxu0 %v543
    %772 = vmatpush.msra.mxu0 %v535
    %773 = vmatmul.f32.gmra.mxu0 %v530
    %v774 = vpop.f32.mrf.mxu0
    %v775 = vadd.f32 %v665, %v774
    %776 = vdwg.mxu0
    %777 = vmatpush.msra.mxu0 %v656
    %778 = vmatpush.msra.mxu0 %v648
    %779 = vmatpush.msra.mxu0 %v640
    %780 = vmatpush.msra.mxu0 %v632
    %781 = vmatpush.msra.mxu0 %v624
    %782 = vmatpush.msra.mxu0 %v616
    %783 = vmatpush.msra.mxu0 %v608
    %784 = vmatpush.msra.mxu0 %v600
    %785 = vmatpush.msra.mxu0 %v592
    %786 = vmatpush.msra.mxu0 %v584
    %787 = vmatpush.msra.mxu0 %v576
    %788 = vmatpush.msra.mxu0 %v568
    %789 = vmatpush.msra.mxu0 %v560
    %790 = vmatpush.msra.mxu0 %v552
    %791 = vmatpush.msra.mxu0 %v544
    %792 = vmatpush.msra.mxu0 %v536
    %793 = vmatmul.f32.gmra.mxu0 %v530
    %v794 = vpop.f32.mrf.mxu0
    %v795 = vadd.f32 %v666, %v794
    %796 = vdwg.mxu0
    %797 = vmatpush.msra.mxu0 %v657
    %798 = vmatpush.msra.mxu0 %v649
    %799 = vmatpush.msra.mxu0 %v641
    %800 = vmatpush.msra.mxu0 %v633
    %801 = vmatpush.msra.mxu0 %v625
    %802 = vmatpush.msra.mxu0 %v617
    %803 = vmatpush.msra.mxu0 %v609
    %804 = vmatpush.msra.mxu0 %v601
    %805 = vmatpush.msra.mxu0 %v593
    %806 = vmatpush.msra.mxu0 %v585
    %807 = vmatpush.msra.mxu0 %v577
    %808 = vmatpush.msra.mxu0 %v569
    %809 = vmatpush.msra.mxu0 %v561
    %810 = vmatpush.msra.mxu0 %v553
    %811 = vmatpush.msra.mxu0 %v545
    %812 = vmatpush.msra.mxu0 %v537
    %813 = vmatmul.f32.gmra.mxu0 %v530
    %v814 = vpop.f32.mrf.mxu0
    %v815 = vadd.f32 %v667, %v814
    %816 = vdwg.mxu0
    %817 = vmatpush.msra.mxu0 %v658
    %818 = vmatpush.msra.mxu0 %v650
    %819 = vmatpush.msra.mxu0 %v642
    %820 = vmatpush.msra.mxu0 %v634
    %821 = vmatpush.msra.mxu0 %v626
    %822 = vmatpush.msra.mxu0 %v618
    %823 = vmatpush.msra.mxu0 %v610
    %824 = vmatpush.msra.mxu0 %v602
    %825 = vmatpush.msra.mxu0 %v594
    %826 = vmatpush.msra.mxu0 %v586
    %827 = vmatpush.msra.mxu0 %v578
    %828 = vmatpush.msra.mxu0 %v570
    %829 = vmatpush.msra.mxu0 %v562
    %830 = vmatpush.msra.mxu0 %v554
    %831 = vmatpush.msra.mxu0 %v546
    %832 = vmatpush.msra.mxu0 %v538
    %833 = vmatmul.f32.gmra.mxu0 %v530
    %v834 = vpop.f32.mrf.mxu0
    %v835 = vadd.f32 %v668, %v834
    %836 = vdwg.mxu0
    %837 = vst [vmem:[#allocation11] sm:$0xff] %v488
    %v846 = vrot.slane %v715, 6
    %v847 = vrot.slane %v735, 4
    %v848 = vrot.slane %v755, 2
    %v849 = vrot.slane %v795, 6
    %v850 = vrot.slane %v815, 4
    %v851 = vrot.slane %v835, 2
    %vm852 = vcmask 1041408
    %v853 = vsel %vm852, %v695, %v846
    %vm854 = vcmask 1045508
    %v855 = vsel %vm854, %v847, %v848
    %vm856 = vcmask 1043456
    %v857 = vsel %vm856, %v853, %v855
    %v858 = vsel %vm852, %v775, %v849
    %v859 = vsel %vm854, %v850, %v851
    %v860 = vsel %vm856, %v858, %v859
    %vm861 = vcmask 1043458
    %v862 = vsel %vm861, %v695, %v846
    %vm863 = vcmask 1045504
    %v864 = vsel %vm863, %v848, %v847
    %vm865 = vcmask 1045506
    %v866 = vsel %vm865, %v862, %v864
    %v867 = vrot.slane %v866, 2
    %v868 = vsel %vm861, %v775, %v849
    %v869 = vsel %vm863, %v851, %v850
    %v870 = vsel %vm865, %v868, %v869
    %v871 = vrot.slane %v870, 2
    %v872 = vsel %vm854, %v695, %v846
    %v873 = vsel %vm852, %v847, %v848
    %v874 = vsel %vm856, %v873, %v872
    %v875 = vrot.slane %v874, 4
    %v876 = vsel %vm854, %v775, %v849
    %v877 = vsel %vm852, %v850, %v851
    %v878 = vsel %vm856, %v877, %v876
    %v879 = vrot.slane %v878, 4
    %v880 = vsel %vm863, %v846, %v695
    %v881 = vsel %vm861, %v847, %v848
    %v882 = vsel %vm865, %v881, %v880
    %v883 = vrot.slane %v882, 6
    %v884 = vsel %vm863, %v849, %v775
    %v885 = vsel %vm861, %v850, %v851
    %v886 = vsel %vm865, %v885, %v884
    %v887 = vrot.slane %v886, 6
    %896 = vst [vmem:[#allocation12] sm:$0xff] %v857
    %897 = vst [vmem:[#allocation12 + $0x8] sm:$0xff] %v860
    %898 = vst [vmem:[#allocation12 + $0x10] sm:$0xff] %v867
    %899 = vst [vmem:[#allocation12 + $0x18] sm:$0xff] %v871
    %900 = vst [vmem:[#allocation12 + $0x20] sm:$0xff] %v875
    %901 = vst [vmem:[#allocation12 + $0x28] sm:$0xff] %v879
    %902 = vst [vmem:[#allocation12 + $0x30] sm:$0xff] %v883
    %903 = vst [vmem:[#allocation12 + $0x38] sm:$0xff] %v887
    %s904 = smul.u32 0, 8
    %v905 = vlaneseq
    %v906 = vshrl.u32 %v905, 7
    %v907 = vstv %s904
    %v908 = vadd.s32 %v907, %v906
    %vm909 = vcmp.lt.s32.totalorder %v908, 2
    %910 = vst [vmem:[#allocation1] ss:$4 sm:$0xff] %v110
    %s911 = scalar_lea.vmem [#allocation1], 1
    %912 = vst [vmem:[%s911] ss:$4 sm:$0xff] %v112
    %s913 = scalar_lea.vmem [#allocation1], 2
    %914 = vst [vmem:[%s913] ss:$4 sm:$0xff] %v114
    %s915 = scalar_lea.vmem [#allocation1], 3
    %916 = vst [vmem:[%s915] ss:$4 sm:$0xff] %v116
    %s917 = scalar_lea.vmem [#allocation1], 32
    %918 = vst [vmem:[%s917] ss:$4 sm:$0xff] %v111
    %s919 = scalar_lea.vmem [#allocation1], 33
    %920 = vst [vmem:[%s919] ss:$4 sm:$0xff] %v113
    %s921 = scalar_lea.vmem [#allocation1], 34
    %922 = vst [vmem:[%s921] ss:$4 sm:$0xff] %v115
    %s923 = scalar_lea.vmem [#allocation1], 35
    %924 = vst [vmem:[%s923] ss:$4 sm:$0xff] %v117
    %v925 = vld.sshfl [vmem:[#allocation1] sm:$0xff pattern:$0x73625140]
    %v926 = vld.sshfl [vmem:[#allocation1 + $0x8] sm:$0xff pattern:$0x73625140]
    %v927 = vld.sshfl [vmem:[#allocation1 + $0x10] sm:$0xff pattern:$0x73625140]
    %v928 = vld.sshfl [vmem:[#allocation1 + $0x18] sm:$0xff pattern:$0x73625140]
    %v929 = vld.sshfl [vmem:[#allocation1 + $0x20] sm:$0xff pattern:$0x73625140]
    %v930 = vld.sshfl [vmem:[#allocation1 + $0x28] sm:$0xff pattern:$0x73625140]
    %v931 = vld.sshfl [vmem:[#allocation1 + $0x30] sm:$0xff pattern:$0x73625140]
    %v932 = vld.sshfl [vmem:[#allocation1 + $0x38] sm:$0xff pattern:$0x73625140]
    %v941 = vsub.f32 %v695, %v925
    %v942 = vsub.f32 %v715, %v926
    %v943 = vsub.f32 %v735, %v927
    %v944 = vsub.f32 %v755, %v928
    %v945 = vsub.f32 %v775, %v929
    %v946 = vsub.f32 %v795, %v930
    %v947 = vsub.f32 %v815, %v931
    %v948 = vsub.f32 %v835, %v932
    %v949 = vsel %vm909, 1, 0
    %vm950 = vcmp.eq.s32.totalorder %v949, 1
    %v951 = vsel %vm950, %v941, 0.0
    %v952 = vsel %vm950, %v942, 0.0
    %v953 = vsel %vm950, %v943, 0.0
    %v954 = vsel %vm950, %v944, 0.0
    %v955 = vsel %vm950, %v945, 0.0
    %v956 = vsel %vm950, %v946, 0.0
    %v957 = vsel %vm950, %v947, 0.0
    %v958 = vsel %vm950, %v948, 0.0
    %v959 = vmul.f32 %v951, %v951
    %v960 = vmul.f32 %v952, %v952
    %v961 = vmul.f32 %v953, %v953
    %v962 = vmul.f32 %v954, %v954
    %v963 = vmul.f32 %v955, %v955
    %v964 = vmul.f32 %v956, %v956
    %v965 = vmul.f32 %v957, %v957
    %v966 = vmul.f32 %v958, %v958
    %v967 = vadd.f32 %v959, %v960
    %v968 = vadd.f32 %v967, %v961
    %v969 = vadd.f32 %v968, %v962
    %v970 = vadd.f32 %v969, %v963
    %v971 = vadd.f32 %v970, %v964
    %v972 = vadd.f32 %v971, %v965
    %v973 = vadd.f32 %v972, %v966
    %974 = vadd.xlane.f32.xlu0 %v973
    %v975 = vpop.xlane.xlu0 %974
    %v976 = vrot.slane %v975, 4
    %v977 = vadd.f32 %v975, %v976
    %v978 = vrot.slane %v977, 2
    %v979 = vadd.f32 %v977, %v978
    %v980 = vrot.slane %v979, 1
    %v981 = vadd.f32 %v979, %v980
    %s982 = vtos %v981
    %v983 = vstv %s982
    %v984 = vadd.f32 %v983, 0.0
    %985 = vst [vmem:[%s11] sm:$0xff] %v984
    // Predicated region
    $region58: #{base_ae_forward.1} parent=1 // pred_check
      _
    $region59: #{base_ae_forward.1} parent=1 // pred_check_branch
      %987 = sbr.rel (0) target = $region61
    $region60: #{base_ae_forward.1} parent=1 // pred_region
      %989 = vsyncadd [#allocation4], 96
      %s990 = sshll.u32 [#allocation11], 4
      %s991 = int_to_ptr.vmem [resolvable:$true] %s990
      %s992 = sshll.u32 %s9, 4
      %s993 = int_to_ptr.hbm [resolvable:$true] %s992
      %998 = dma.vmem_to_hbm [thread:$0]  %s991, 32, %s993, [#allocation4], 32, 32, 2
    $region61: #{base_ae_forward.1} parent=1 // pred_fallthru
      _
    // Predicated region
    $region62: #{base_ae_forward.1} parent=1 // pred_check
      _
    $region63: #{base_ae_forward.1} parent=1 // pred_check_branch
      %1000 = sbr.rel (0) target = $region65
    $region64: #{base_ae_forward.1} parent=1 // pred_region
      // Predicated region
      $region66: #{base_ae_forward.1} parent=64 // pred_check
        _
      $region67: #{base_ae_forward.1} parent=64 // pred_check_branch
        %1002 = sbr.rel (0) target = $region69
      $region68: #{base_ae_forward.1} parent=64 // pred_region
        // Predicated region
        $region70: #{base_ae_forward.1} parent=68 // pred_check
          _
        $region71: #{base_ae_forward.1} parent=68 // pred_check_branch
          %1004 = sbr.rel (0) target = $region73
        $region72: #{base_ae_forward.1} parent=68 // pred_region
          loop: start=0, step=1, limit=1
          $region74: #{base_ae_forward.1} parent=72 // loop_pre_header
            _
          $region75: #{base_ae_forward.1} parent=72 // loop_header
            %s1006 = sphi 0, %s1010
            %p1007 = scmp.ge.s32.totalorder %s1006, 1
            %s1011 = sphi [#allocation12], [#allocation12]
            %s1012 = sphi %s10, %s10
          $region76: #{base_ae_forward.1} parent=72 // loop_header_branch
            %1009 = sbr.rel (%p1007) target = $region80
          $region77: #{base_ae_forward.1} parent=72 // loop_body
            %v1013 = vld [vmem:[%s1011] sm:$0xff]
            %1014 = vst [vmem:[%s1012] sm:$0xff] %v1013
            %v1015 = vld [vmem:[%s1011 + $0x8] sm:$0xff]
            %1016 = vst [vmem:[%s1012 + $0x8] sm:$0xff] %v1015
          $region78: #{base_ae_forward.1} parent=72 // loop_footer
            %s1010 = sadd.s32 1, %s1006
          $region79: #{base_ae_forward.1} parent=72 // loop_footer_branch
            %1005 = sbr.rel target = $region75
          $region80: #{base_ae_forward.1} parent=72 // loop_exit
            _
        $region73: #{base_ae_forward.1} parent=68 // pred_fallthru
          _
        // Predicated region
        $region81: #{base_ae_forward.1} parent=68 // pred_check
          _
        $region82: #{base_ae_forward.1} parent=68 // pred_check_branch
          %1018 = sbr.rel target = $region84
        $region83: #{base_ae_forward.1} parent=68 // pred_region
          _
        $region84: #{base_ae_forward.1} parent=68 // pred_fallthru
          _
      $region69: #{base_ae_forward.1} parent=64 // pred_fallthru
        _
      %1019 = vnop
    $region65: #{base_ae_forward.1} parent=1 // pred_fallthru
      _
    // Predicated region
    $region85: #{base_ae_forward.1} parent=1 // pred_check
      _
    $region86: #{base_ae_forward.1} parent=1 // pred_check_branch
      %1021 = sbr.rel (0) target = $region88
    $region87: #{base_ae_forward.1} parent=1 // pred_region
      _
    $region88: #{base_ae_forward.1} parent=1 // pred_fallthru
      _
    // Predicated region
    $region89: #{base_ae_forward.1} parent=1 // pred_check
      _
    $region90: #{base_ae_forward.1} parent=1 // pred_check_branch
      %1023 = sbr.rel (0) target = $region92
    $region91: #{base_ae_forward.1} parent=1 // pred_region
      %1025 = dma.done [#allocation4], 128
    $region92: #{base_ae_forward.1} parent=1 // pred_fallthru
      _
    // Predicated region
    $region93: #{base_ae_forward.1} parent=1 // pred_check
      _
    $region94: #{base_ae_forward.1} parent=1 // pred_check_branch
      %1027 = sbr.rel (0) target = $region96
    $region95: #{base_ae_forward.1} parent=1 // pred_region
      _
    $region96: #{base_ae_forward.1} parent=1 // pred_fallthru
      _
    // Predicated region
    $region97: #{base_ae_forward.1} parent=1 // pred_check
      _
    $region98: #{base_ae_forward.1} parent=1 // pred_check_branch
      %1029 = sbr.rel (0) target = $region100
    $region99: #{base_ae_forward.1} parent=1 // pred_region
      _
    $region100: #{base_ae_forward.1} parent=1 // pred_fallthru
      _
    %1030 = vsyncpa [#allocation3], 1
    %1031 = vsyncpa [#allocation6], 1
    %1032 = vsyncpa [#allocation9], 1
    %1033 = vsyncpa [#allocation4], 1

</llo_original>
